<compile_context>
chip_gen: v5e
topology: v5e:2x2
jax: 0.10.0
libtpu: 0.0.40
codegen_flags: <defaults>
</compile_context>

<pallas_src>
import jax
import jax.numpy as jnp
from jax.experimental import pallas as pl
from jax.experimental.pallas import tpu as pltpu


def _round_up(x, m):
    return (x + m - 1) // m * m


def _cdiv(a, b):
    return (a + b - 1) // b


def mlp_kernel(x_ref, w1_ref, b1_ref, w2_ref, b2_ref, w3_ref, b3_ref, o_ref):
    """x tile (IN, TB) feature-major; BN-folded weights; output (1, TB) lane-dense."""
    x = x_ref[...]                                        # (IN, TB)

    # Layer 1: (H0, IN) @ (IN, TB) -> (H0, TB)
    h = jnp.dot(w1_ref[...], x, preferred_element_type=jnp.float32)
    h = jnp.maximum(h + b1_ref[...], 0.0)
    # Dropout(0.2): identity in eval mode.

    # Layer 2: (H1, H0) @ (H0, TB) -> (H1, TB)
    h = jnp.dot(w2_ref[...], h, preferred_element_type=jnp.float32)
    h = jnp.maximum(h + b2_ref[...], 0.0)
    # Dropout(0.1): identity in eval mode.

    # Output layer: (1, H1) @ (H1, TB) -> (1, TB), one lane-dense row store.
    o_ref[...] = (jnp.dot(w3_ref[...], h, preferred_element_type=jnp.float32)
                  + b3_ref[...])


def _vmem_bytes_estimate(tb, in_dim, h0, h1, x_itemsize):
    """Rough per-call VMEM footprint with sublane(8)/lane(128) padding."""
    pad8 = lambda n: _round_up(n, 8)
    pad128 = lambda n: _round_up(n, 128)
    x_blk = pad8(in_dim) * tb * x_itemsize             # streamed x block
    out_blk = pad8(1) * tb * 4                         # (1, TB) f32 output block
    interm = (pad8(h0) + pad8(h1)) * tb * 4            # layer activations (f32)
    weights = 4 * (pad8(h0) * pad128(in_dim) + pad8(h1) * pad128(h0)
                   + pad8(1) * pad128(h1)
                   + (pad8(h0) + pad8(h1) + pad8(1)) * 128)
    # x / out are double-buffered by the pipeline; weights use constant index.
    return 2 * (x_blk + out_blk) + interm + 2 * weights


def linear_regression_forward(x, kp, *, tb_max=16384, x_dtype=jnp.float32,
                              vmem_budget=40 * 1024 * 1024):
    """x: [B, 10] float32 -> [B, 1] float32 (eval-mode forward)."""
    B, IN = x.shape
    w1, b1 = kp["w1"], kp["b1"]          # (H0, IN), (H0, 1)
    w2, b2 = kp["w2"], kp["b2"]          # (H1, H0), (H1, 1)
    w3, b3 = kp["w3"], kp["b3"]          # (1, H1),  (1, 1)
    H0, H1 = w1.shape[0], w2.shape[0]
    x_itemsize = jnp.dtype(x_dtype).itemsize

    # --- batch tile selection ------------------------------------------------
    b128 = _round_up(B, 128)
    TB = min(_round_up(tb_max, 128), b128)
    # Keep >= 2 grid steps when the batch allows it so ("parallel",) sharding
    # actually uses both v7x TensorCores (no effect on single-TC v5e/v6e).
    if b128 >= 2 * 128:
        TB = min(TB, _round_up(_cdiv(b128, 2), 128))
    # Clamp TB so the pipeline footprint fits comfortably on every generation
    # (v7x has only 64 MiB physical VMEM).
    while TB > 128 and _vmem_bytes_estimate(TB, IN, H0, H1, x_itemsize) > vmem_budget:
        TB = _round_up(TB // 2, 128)

    Bp = _round_up(B, TB)
    grid = (Bp // TB,)

    # Feature-major x: (IN, Bp). The streamed (IN, TB) block pads only
    # 10 -> 16 sublanes (vs 10 -> 128 lanes for a (TB, IN) block) and feeds
    # the MXU with the batch on the lane axis. Costs one extra HBM pass over x
    # for the transpose/pad/cast (done once by XLA outside the kernel).
    xt = x.T.astype(x_dtype)
    if Bp != B:
        xt = jnp.pad(xt, ((0, 0), (0, Bp - B)))   # zero cols: finite, sliced off

    flops = 2 * B * (IN * H0 + H0 * H1 + H1)
    bytes_accessed = (B * IN * x_itemsize + B * 4
                      + 4 * (IN * H0 + H0 + H0 * H1 + H1 + H1 + 1))
    vmem_limit = int(min(48 * 1024 * 1024,
                         max(32 * 1024 * 1024,
                             2 * _vmem_bytes_estimate(TB, IN, H0, H1, x_itemsize))))

    out = pl.pallas_call(
        mlp_kernel,
        out_shape=jax.ShapeDtypeStruct((1, Bp), jnp.float32),
        grid_spec=pltpu.PrefetchScalarGridSpec(
            num_scalar_prefetch=0,
            grid=grid,
            in_specs=[
                pl.BlockSpec((IN, TB), lambda i: (0, i)),    # x: streamed batch tiles
                pl.BlockSpec((H0, IN), lambda i: (0, 0)),    # weights: VMEM-resident
                pl.BlockSpec((H0, 1), lambda i: (0, 0)),
                pl.BlockSpec((H1, H0), lambda i: (0, 0)),
                pl.BlockSpec((H1, 1), lambda i: (0, 0)),
                pl.BlockSpec((1, H1), lambda i: (0, 0)),
                pl.BlockSpec((1, 1), lambda i: (0, 0)),
            ],
            out_specs=pl.BlockSpec((1, TB), lambda i: (0, i)),
        ),
        compiler_params=pltpu.CompilerParams(
            dimension_semantics=("parallel",),
            vmem_limit_bytes=vmem_limit,
        ),
        cost_estimate=pl.CostEstimate(
            flops=int(flops), transcendentals=0,
            bytes_accessed=int(bytes_accessed)),
    )(xt, w1, b1, w2, b2, w3, b3)

    return out[0, :B].reshape(B, 1)


def init_params(key, in_dim=10, h0=32, h1=16):
    """PyTorch-style linear init + non-trivial BatchNorm running stats (eval mode)."""
    ks = jax.random.split(key, 14)

    def lin(kw, kb, fan_in, fan_out):
        bound = 1.0 / jnp.sqrt(fan_in)
        w = jax.random.uniform(kw, (fan_in, fan_out), jnp.float32, -bound, bound)
        b = jax.random.uniform(kb, (1, fan_out), jnp.float32, -bound, bound)
        return w, b

    def bn(kg, kb, km, kv, dim):
        gamma = jax.random.uniform(kg, (1, dim), jnp.float32, 0.5, 1.5)
        beta = 0.1 * jax.random.normal(kb, (1, dim), jnp.float32)
        rmean = 0.1 * jax.random.normal(km, (1, dim), jnp.float32)
        rvar = jax.random.uniform(kv, (1, dim), jnp.float32, 0.5, 1.5)
        return gamma, beta, rmean, rvar

    w1, b1 = lin(ks[0], ks[1], in_dim, h0)
    g1, be1, rm1, rv1 = bn(ks[2], ks[3], ks[4], ks[5], h0)
    w2, b2 = lin(ks[6], ks[7], h0, h1)
    g2, be2, rm2, rv2 = bn(ks[8], ks[9], ks[10], ks[11], h1)
    w3, b3 = lin(ks[12], ks[13], h1, 1)
    return dict(w1=w1, b1=b1, g1=g1, be1=be1, rm1=rm1, rv1=rv1,
                w2=w2, b2=b2, g2=g2, be2=be2, rm2=rm2, rv2=rv2,
                w3=w3, b3=b3)


def fold_for_kernel(p, eps=1e-5):
    """Fold eval-mode BatchNorm into the linear weights; transpose to feature-major."""
    s1 = p["g1"] / jnp.sqrt(p["rv1"] + eps)
    t1 = p["be1"] - p["rm1"] * s1
    s2 = p["g2"] / jnp.sqrt(p["rv2"] + eps)
    t2 = p["be2"] - p["rm2"] * s2
    return dict(
        w1=(p["w1"] * s1).T,            # (h0, in)
        b1=(p["b1"] * s1 + t1).T,       # (h0, 1)
        w2=(p["w2"] * s2).T,            # (h1, h0)
        b2=(p["b2"] * s2 + t2).T,       # (h1, 1)
        w3=p["w3"].T,                   # (1, h1)
        b3=p["b3"].reshape(1, 1),       # (1, 1)
    )


def reference_forward(x, p, eps=1e-5):
    """Pure-JAX reference: Linear -> BN(eval) -> ReLU -> Linear -> BN -> ReLU -> Linear."""
    h = x @ p["w1"] + p["b1"]
    h = (h - p["rm1"]) / jnp.sqrt(p["rv1"] + eps) * p["g1"] + p["be1"]
    h = jnp.maximum(h, 0.0)
    h = h @ p["w2"] + p["b2"]
    h = (h - p["rm2"]) / jnp.sqrt(p["rv2"] + eps) * p["g2"] + p["be2"]
    h = jnp.maximum(h, 0.0)
    return h @ p["w3"] + p["b3"]


if __name__ == "__main__":
    key = jax.random.PRNGKey(0)
    k_x, k_x2, k_p = jax.random.split(key, 3)

    IN = 10
    params = init_params(k_p, in_dim=IN, h0=32, h1=16)
    kparams = fold_for_kernel(params)

    # Small batch (single tile).
    B = 8
    x = jax.random.normal(k_x, (B, IN), jnp.float32)
    out = jax.block_until_ready(linear_regression_forward(x, kparams))
    ref = reference_forward(x, params)
    assert out.shape == (B, 1)
    assert jnp.allclose(out, ref, atol=2e-4, rtol=2e-4), \
        float(jnp.max(jnp.abs(out - ref)))

    # Larger batch exercising padding + a multi-step ("parallel") grid.
    B2 = 300
    x2 = jax.random.normal(k_x2, (B2, IN), jnp.float32)
    out2 = jax.block_until_ready(linear_regression_forward(x2, kparams))
    ref2 = reference_forward(x2, params)
    assert out2.shape == (B2, 1)
    assert jnp.allclose(out2, ref2, atol=2e-4, rtol=2e-4), \
        float(jnp.max(jnp.abs(out2 - ref2)))

    print("KERNEL_OK")
</pallas_src>

<mosaic_0001>
module attributes {stable_mosaic.version = 11 : i64} {
  func.func @mlp_kernel(%arg0: i32, %arg1: memref<10x128xf32, #tpu.memory_space<vmem>>, %arg2: memref<32x10xf32, #tpu.memory_space<vmem>>, %arg3: memref<32x1xf32, #tpu.memory_space<vmem>>, %arg4: memref<16x32xf32, #tpu.memory_space<vmem>>, %arg5: memref<16x1xf32, #tpu.memory_space<vmem>>, %arg6: memref<1x16xf32, #tpu.memory_space<vmem>>, %arg7: memref<1x1xf32, #tpu.memory_space<vmem>>, %arg8: memref<1x128xf32, #tpu.memory_space<vmem>>) attributes {dimension_semantics = [#tpu.dimension_semantics<parallel>], iteration_bounds = array<i64: 1>, scalar_prefetch = 0 : i64, scratch_operands = 0 : i64, tpu.core_type = #tpu.core_type<tc>, window_params = [{transform_indices = @transform_0, window_bounds = array<i64: 10, 128>}, {pipeline_mode = #tpu.pipeline_mode<synchronous>, transform_indices = @transform_1, window_bounds = array<i64: 32, 10>}, {pipeline_mode = #tpu.pipeline_mode<synchronous>, transform_indices = @transform_2, window_bounds = array<i64: 32, 1>}, {pipeline_mode = #tpu.pipeline_mode<synchronous>, transform_indices = @transform_3, window_bounds = array<i64: 16, 32>}, {pipeline_mode = #tpu.pipeline_mode<synchronous>, transform_indices = @transform_4, window_bounds = array<i64: 16, 1>}, {pipeline_mode = #tpu.pipeline_mode<synchronous>, transform_indices = @transform_5, window_bounds = array<i64: 1, 16>}, {pipeline_mode = #tpu.pipeline_mode<synchronous>, transform_indices = @transform_6, window_bounds = array<i64: 1, 1>}, {transform_indices = @transform_7, window_bounds = array<i64: 1, 128>}]} {
    %c0 = arith.constant 0 : index
    %c0_0 = arith.constant 0 : index
    %0 = vector.load %arg1[%c0, %c0_0] : memref<10x128xf32, #tpu.memory_space<vmem>>, vector<10x128xf32>
    %c0_1 = arith.constant 0 : index
    %c0_2 = arith.constant 0 : index
    %1 = vector.load %arg2[%c0_1, %c0_2] : memref<32x10xf32, #tpu.memory_space<vmem>>, vector<32x10xf32>
    %cst = arith.constant dense<0.000000e+00> : vector<32x128xf32>
    %2 = tpu.matmul %1, %0, %cst {dimension_numbers = #tpu.dot_dimension_numbers<[1], [0], [0], [1], [0, 0, 1, 1], [], []>} : vector<32x10xf32>, vector<10x128xf32>, vector<32x128xf32> -> vector<32x128xf32>
    %c0_3 = arith.constant 0 : index
    %c0_4 = arith.constant 0 : index
    %3 = vector.load %arg3[%c0_3, %c0_4] : memref<32x1xf32, #tpu.memory_space<vmem>>, vector<32x1xf32>
    %4 = vector.broadcast %3 : vector<32x1xf32> to vector<32x128xf32>
    %5 = arith.addf %2, %4 : vector<32x128xf32>
    %cst_5 = arith.constant 0.000000e+00 : f32
    %6 = vector.broadcast %cst_5 : f32 to vector<32x128xf32>
    %7 = arith.maximumf %5, %6 : vector<32x128xf32>
    %c0_6 = arith.constant 0 : index
    %c0_7 = arith.constant 0 : index
    %8 = vector.load %arg4[%c0_6, %c0_7] : memref<16x32xf32, #tpu.memory_space<vmem>>, vector<16x32xf32>
    %cst_8 = arith.constant dense<0.000000e+00> : vector<16x128xf32>
    %9 = tpu.matmul %8, %7, %cst_8 {dimension_numbers = #tpu.dot_dimension_numbers<[1], [0], [0], [1], [0, 0, 1, 1], [], []>} : vector<16x32xf32>, vector<32x128xf32>, vector<16x128xf32> -> vector<16x128xf32>
    %c0_9 = arith.constant 0 : index
    %c0_10 = arith.constant 0 : index
    %10 = vector.load %arg5[%c0_9, %c0_10] : memref<16x1xf32, #tpu.memory_space<vmem>>, vector<16x1xf32>
    %11 = vector.broadcast %10 : vector<16x1xf32> to vector<16x128xf32>
    %12 = arith.addf %9, %11 : vector<16x128xf32>
    %cst_11 = arith.constant 0.000000e+00 : f32
    %13 = vector.broadcast %cst_11 : f32 to vector<16x128xf32>
    %14 = arith.maximumf %12, %13 : vector<16x128xf32>
    %c0_12 = arith.constant 0 : index
    %c0_13 = arith.constant 0 : index
    %15 = vector.load %arg6[%c0_12, %c0_13] : memref<1x16xf32, #tpu.memory_space<vmem>>, vector<1x16xf32>
    %cst_14 = arith.constant dense<0.000000e+00> : vector<1x128xf32>
    %16 = tpu.matmul %15, %14, %cst_14 {dimension_numbers = #tpu.dot_dimension_numbers<[1], [0], [0], [1], [0, 0, 1, 1], [], []>} : vector<1x16xf32>, vector<16x128xf32>, vector<1x128xf32> -> vector<1x128xf32>
    %c0_15 = arith.constant 0 : index
    %c0_16 = arith.constant 0 : index
    %17 = vector.load %arg7[%c0_15, %c0_16] : memref<1x1xf32, #tpu.memory_space<vmem>>, vector<1x1xf32>
    %18 = vector.broadcast %17 : vector<1x1xf32> to vector<1x128xf32>
    %19 = arith.addf %16, %18 : vector<1x128xf32>
    %c0_17 = arith.constant 0 : index
    %c0_18 = arith.constant 0 : index
    %20 = vector.load %arg8[%c0_17, %c0_18] : memref<1x128xf32, #tpu.memory_space<vmem>>, vector<1x128xf32>
    tpu.vector_store %arg8[%c0_17, %c0_18], %19 {strides = array<i32>} : memref<1x128xf32, #tpu.memory_space<vmem>>, vector<1x128xf32>,
    return
  }
  func.func @transform_0(%arg0: i32) -> (i32, i32) {
    %c0_i32 = arith.constant 0 : i32
    %c0_i32_0 = arith.constant 0 : i32
    return %c0_i32, %arg0 : i32, i32
  }
  func.func @transform_1(%arg0: i32) -> (i32, i32) {
    %c0_i32 = arith.constant 0 : i32
    %c0_i32_0 = arith.constant 0 : i32
    %c0_i32_1 = arith.constant 0 : i32
    return %c0_i32, %c0_i32_0 : i32, i32
  }
  func.func @transform_2(%arg0: i32) -> (i32, i32) {
    %c0_i32 = arith.constant 0 : i32
    %c0_i32_0 = arith.constant 0 : i32
    %c0_i32_1 = arith.constant 0 : i32
    return %c0_i32, %c0_i32_0 : i32, i32
  }
  func.func @transform_3(%arg0: i32) -> (i32, i32) {
    %c0_i32 = arith.constant 0 : i32
    %c0_i32_0 = arith.constant 0 : i32
    %c0_i32_1 = arith.constant 0 : i32
    return %c0_i32, %c0_i32_0 : i32, i32
  }
  func.func @transform_4(%arg0: i32) -> (i32, i32) {
    %c0_i32 = arith.constant 0 : i32
    %c0_i32_0 = arith.constant 0 : i32
    %c0_i32_1 = arith.constant 0 : i32
    return %c0_i32, %c0_i32_0 : i32, i32
  }
  func.func @transform_5(%arg0: i32) -> (i32, i32) {
    %c0_i32 = arith.constant 0 : i32
    %c0_i32_0 = arith.constant 0 : i32
    %c0_i32_1 = arith.constant 0 : i32
    return %c0_i32, %c0_i32_0 : i32, i32
  }
  func.func @transform_6(%arg0: i32) -> (i32, i32) {
    %c0_i32 = arith.constant 0 : i32
    %c0_i32_0 = arith.constant 0 : i32
    %c0_i32_1 = arith.constant 0 : i32
    return %c0_i32, %c0_i32_0 : i32, i32
  }
  func.func @transform_7(%arg0: i32) -> (i32, i32) {
    %c0_i32 = arith.constant 0 : i32
    %c0_i32_0 = arith.constant 0 : i32
    return %c0_i32, %arg0 : i32, i32
  }
}

</mosaic_0001>

<llo_original>
// kernel: tpu_custom_call.1
$region0: #{tpu_custom_call.1}
  #allocation0 [shape = 'u32[]', space=smem, size = 0x4, offset = 0x4, fixed_abs, tag = 'smem constant byte address 0x4 - core index']
  #allocation1 [shape = 'u32[72,128]{1,0:T(1,128)}', space=vmem, size = 0x9000, scoped, tag = 'internal scratch']
  #allocation2 [shape = 'f32[1,1]{1,0:T(1,128)S(1)}', space=vmem, size = 0x200, scoped, tag = 'scoped memory for tpu_custom_call.1']
  %s0 = inlined_call_operand.vmem [shape: f32[10,128], index: 0, kind: input, shape index: {}]
  %s1 = inlined_call_operand.vmem [shape: f32[32,10], index: 1, kind: input, shape index: {}]
  %s2 = inlined_call_operand.vmem [shape: f32[32,1], index: 2, kind: input, shape index: {}]
  %s3 = inlined_call_operand.vmem [shape: f32[16,32], index: 3, kind: input, shape index: {}]
  %s4 = inlined_call_operand.vmem [shape: f32[16,1], index: 4, kind: input, shape index: {}]
  %s5 = inlined_call_operand.vmem [shape: f32[1,16], index: 5, kind: input, shape index: {}]
  %s6 = inlined_call_operand.<no memory space> [shape: f32[1,1], index: 6, kind: input, shape index: {}]
  %s7 = inlined_call_operand.hbm [shape: f32[1,128], index: 7, kind: output, shape index: {}]
  %s8 = sld [smem:[#allocation0]]
  $region38: #{tpu_custom_call.1} parent=0
    _
  %s10 = ssub.s32 1, %s8
  %s11 = scalar_select 0, %s10, %s8
  %v12 = vstv %s6
  %13 = vst [vmem:[#allocation2] sm:$0x1] %v12
  $region1: #{tpu_custom_call.1} parent=0
    #allocation3 [shape = 'u8[512]{0}', space=vmem, size = 0x400, scoped, tag = 'output window, operand 0, single buffered']
    #allocation4 [shape = 's32[1]{0}', space=sflag, size = 0x4, scoped, tag = 'scoped memory for tpu_custom_call.1']
    %14 = vsyncpa [#allocation4], 0
    // Predicated region
    $region2: #{tpu_custom_call.1} parent=1 // pred_check
      _
    $region3: #{tpu_custom_call.1} parent=1 // pred_check_branch
      %16 = sbr.rel (0) target = $region5
    $region4: #{tpu_custom_call.1} parent=1 // pred_region
      _
    $region5: #{tpu_custom_call.1} parent=1 // pred_fallthru
      _
    // Predicated region
    $region6: #{tpu_custom_call.1} parent=1 // pred_check
      _
    $region7: #{tpu_custom_call.1} parent=1 // pred_check_branch
      %18 = sbr.rel (0) target = $region9
    $region8: #{tpu_custom_call.1} parent=1 // pred_region
      _
    $region9: #{tpu_custom_call.1} parent=1 // pred_fallthru
      _
    // Predicated region
    $region10: #{tpu_custom_call.1} parent=1 // pred_check
      _
    $region11: #{tpu_custom_call.1} parent=1 // pred_check_branch
      %20 = sbr.rel (0) target = $region13
    $region12: #{tpu_custom_call.1} parent=1 // pred_region
      _
    $region13: #{tpu_custom_call.1} parent=1 // pred_fallthru
      _
    // Predicated region
    $region14: #{tpu_custom_call.1} parent=1 // pred_check
      _
    $region15: #{tpu_custom_call.1} parent=1 // pred_check_branch
      %22 = sbr.rel (0) target = $region17
    $region16: #{tpu_custom_call.1} parent=1 // pred_region
      _
    $region17: #{tpu_custom_call.1} parent=1 // pred_fallthru
      _
    // Predicated region
    $region18: #{tpu_custom_call.1} parent=1 // pred_check
      _
    $region19: #{tpu_custom_call.1} parent=1 // pred_check_branch
      %24 = sbr.rel (0) target = $region21
    $region20: #{tpu_custom_call.1} parent=1 // pred_region
      _
    $region21: #{tpu_custom_call.1} parent=1 // pred_fallthru
      _
    // Predicated region
    $region22: #{tpu_custom_call.1} parent=1 // pred_check
      _
    $region23: #{tpu_custom_call.1} parent=1 // pred_check_branch
      %26 = sbr.rel (0) target = $region25
    $region24: #{tpu_custom_call.1} parent=1 // pred_region
      _
    $region25: #{tpu_custom_call.1} parent=1 // pred_fallthru
      _
    // Predicated region
    $region26: #{tpu_custom_call.1} parent=1 // pred_check
      _
    $region27: #{tpu_custom_call.1} parent=1 // pred_check_branch
      %28 = sbr.rel (0) target = $region29
    $region28: #{tpu_custom_call.1} parent=1 // pred_region
      _
    $region29: #{tpu_custom_call.1} parent=1 // pred_fallthru
      _
    %v29 = vld [vmem:[%s0] sm:$0xff]
    %v30 = vld [vmem:[%s0 + $0x8] sm:$0x3]
    %v31 = vld [vmem:[%s1] sm:$0xff]
    %v32 = vld [vmem:[%s1 + $0x8] sm:$0xff]
    %v33 = vld [vmem:[%s1 + $0x10] sm:$0xff]
    %v34 = vld [vmem:[%s1 + $0x18] sm:$0xff]
    %v35 = vld [vmem:[%s2] sm:$0xff]
    %v36 = vld [vmem:[%s2 + $0x8] sm:$0xff]
    %v37 = vld [vmem:[%s2 + $0x10] sm:$0xff]
    %v38 = vld [vmem:[%s2 + $0x18] sm:$0xff]
    %40 = vset.pattern.permute.xlu0 0
    %41 = vperm.xlu0 %40, %v35
    %v42 = vpop.permute.xlu0 %41
    %45 = vset.pattern.permute.xlu0 0
    %46 = vperm.xlu0 %45, %v36
    %v47 = vpop.permute.xlu0 %46
    %50 = vset.pattern.permute.xlu0 0
    %51 = vperm.xlu0 %50, %v37
    %v52 = vpop.permute.xlu0 %51
    %55 = vset.pattern.permute.xlu0 0
    %56 = vperm.xlu0 %55, %v38
    %v57 = vpop.permute.xlu0 %56
    %vm59 = vcmask 80896
    %v61 = vsel %vm59, %v31, 0
    %v64 = vsel %vm59, %v32, 0
    %v67 = vsel %vm59, %v33, 0
    %v70 = vsel %vm59, %v34, 0
    %vm72 = vcmask 1041408
    %v74 = vsel %vm72, %v30, 0
    %76 = vmatpush.msra.mxu0 0.0
    %77 = vmatpush.msra.mxu0 0.0
    %78 = vmatpush.msra.mxu0 0.0
    %79 = vmatpush.msra.mxu0 0.0
    %80 = vmatpush.msra.mxu0 0.0
    %81 = vmatpush.msra.mxu0 0.0
    %82 = vmatpush.msra.mxu0 0.0
    %83 = vmatpush.msra.mxu0 0.0
    %84 = vmatpush.msra.mxu0 0.0
    %85 = vmatpush.msra.mxu0 0.0
    %86 = vmatpush.msra.mxu0 0.0
    %87 = vmatpush.msra.mxu0 0.0
    %88 = vmatpush.msra.mxu0 0.0
    %89 = vmatpush.msra.mxu0 0.0
    %90 = vmatpush.msra.mxu0 %v74
    %91 = vmatpush.msra.mxu0 %v29
    %92 = vmatmul.f32.gmra.mxu0 %v61
    %v93 = vpop.f32.mrf.mxu0
    %v94 = vadd.f32 %v42, %v93
    %95 = vmatmul.f32.gmra.mxu0 %v64
    %v96 = vpop.f32.mrf.mxu0
    %v97 = vadd.f32 %v47, %v96
    %98 = vmatmul.f32.gmra.mxu0 %v67
    %v99 = vpop.f32.mrf.mxu0
    %v100 = vadd.f32 %v52, %v99
    %101 = vmatmul.f32.gmra.mxu0 %v70
    %v102 = vpop.f32.mrf.mxu0
    %v103 = vadd.f32 %v57, %v102
    %104 = vdwg.mxu0
    %v105 = vmax.f32 %v94, 0.0
    %v106 = vmax.f32 %v97, 0.0
    %v107 = vmax.f32 %v100, 0.0
    %v108 = vmax.f32 %v103, 0.0
    %v109 = vld [vmem:[%s3] sm:$0xff]
    %v110 = vld [vmem:[%s3 + $0x8] sm:$0xff]
    %v111 = vld [vmem:[%s4] sm:$0xff]
    %v112 = vld [vmem:[%s4 + $0x8] sm:$0xff]
    %114 = vset.pattern.permute.xlu0 0
    %115 = vperm.xlu0 %114, %v111
    %v116 = vpop.permute.xlu0 %115
    %119 = vset.pattern.permute.xlu0 0
    %120 = vperm.xlu0 %119, %v112
    %v121 = vpop.permute.xlu0 %120
    %vm123 = vcmask 261120
    %v125 = vsel %vm123, %v109, 0
    %v128 = vsel %vm123, %v110, 0
    %130 = vmatpush.msra.mxu0 0.0
    %131 = vmatpush.msra.mxu0 0.0
    %132 = vmatpush.msra.mxu0 0.0
    %133 = vmatpush.msra.mxu0 0.0
    %134 = vmatpush.msra.mxu0 0.0
    %135 = vmatpush.msra.mxu0 0.0
    %136 = vmatpush.msra.mxu0 0.0
    %137 = vmatpush.msra.mxu0 0.0
    %138 = vmatpush.msra.mxu0 0.0
    %139 = vmatpush.msra.mxu0 0.0
    %140 = vmatpush.msra.mxu0 0.0
    %141 = vmatpush.msra.mxu0 0.0
    %142 = vmatpush.msra.mxu0 %v108
    %143 = vmatpush.msra.mxu0 %v107
    %144 = vmatpush.msra.mxu0 %v106
    %145 = vmatpush.msra.mxu0 %v105
    %146 = vmatmul.f32.gmra.mxu0 %v125
    %v147 = vpop.f32.mrf.mxu0
    %v148 = vadd.f32 %v116, %v147
    %149 = vmatmul.f32.gmra.mxu0 %v128
    %v150 = vpop.f32.mrf.mxu0
    %v151 = vadd.f32 %v121, %v150
    %152 = vdwg.mxu0
    %v153 = vmax.f32 %v148, 0.0
    %v154 = vmax.f32 %v151, 0.0
    %v155 = vld [vmem:[%s5] sm:$0x1]
    %v156 = vld [vmem:[#allocation2] sm:$0x1]
    %158 = vset.pattern.permute.xlu0 0
    %159 = vperm.xlu0 %158, %v156
    %v160 = vpop.permute.xlu0 %159
    %v162 = vperm.slane %v160, 0
    %vm163 = vcmask 130048
    %v165 = vsel %vm163, %v155, 0
    %167 = vmatpush.msra.mxu0 0.0
    %168 = vmatpush.msra.mxu0 0.0
    %169 = vmatpush.msra.mxu0 0.0
    %170 = vmatpush.msra.mxu0 0.0
    %171 = vmatpush.msra.mxu0 0.0
    %172 = vmatpush.msra.mxu0 0.0
    %173 = vmatpush.msra.mxu0 0.0
    %174 = vmatpush.msra.mxu0 0.0
    %175 = vmatpush.msra.mxu0 0.0
    %176 = vmatpush.msra.mxu0 0.0
    %177 = vmatpush.msra.mxu0 0.0
    %178 = vmatpush.msra.mxu0 0.0
    %179 = vmatpush.msra.mxu0 0.0
    %180 = vmatpush.msra.mxu0 0.0
    %181 = vmatpush.msra.mxu0 %v154
    %182 = vmatpush.msra.mxu0 %v153
    %183 = vmatmul.f32.gmra.mxu0 %v165
    %v184 = vpop.f32.mrf.mxu0
    %v185 = vadd.f32 %v162, %v184
    %186 = vdwg.mxu0
    %187 = vst [vmem:[#allocation3] sm:$0x1] %v185
    // Predicated region
    $region30: #{tpu_custom_call.1} parent=1 // pred_check
      _
    $region31: #{tpu_custom_call.1} parent=1 // pred_check_branch
      %189 = sbr.rel (0) target = $region33
    $region32: #{tpu_custom_call.1} parent=1 // pred_region
      %191 = vsyncadd [#allocation4], 0
      %s193 = sshll.u32 [#allocation3], 4
      %s194 = int_to_ptr.vmem [resolvable:$true] %s193
      %s195 = sshll.u32 %s7, 4
      %s196 = int_to_ptr.hbm [resolvable:$true] %s195
      %198 = dma.vmem_to_hbm [thread:$0]  %s194, 16, %s196, [#allocation4]
    $region33: #{tpu_custom_call.1} parent=1 // pred_fallthru
      _
    // Predicated region
    $region34: #{tpu_custom_call.1} parent=1 // pred_check
      _
    $region35: #{tpu_custom_call.1} parent=1 // pred_check_branch
      %200 = sbr.rel (0) target = $region37
    $region36: #{tpu_custom_call.1} parent=1 // pred_region
      %202 = dma.done [#allocation4], 16
    $region37: #{tpu_custom_call.1} parent=1 // pred_fallthru
      _
    %203 = vsyncpa [#allocation4], 1

</llo_original>
